<compile_context>
chip_gen: v7x
topology: tpu7x:2x2x1
jax: 0.10.0
libtpu: 0.0.40
codegen_flags: <defaults>
</compile_context>

<pallas_src>
import functools

import jax
import jax.numpy as jnp
import numpy as np
from jax.experimental import pallas as pl
from jax.experimental.pallas import tpu as pltpu


def _stunet_fused_kernel(pooled_ref, wf_ref, bf_ref, w2_ref, b2_ref, out_ref,
                         *, nbu, nc, dq, out_used):
    """Fused branches + attention for one batch tile.

    pooled_ref : (BT, C_in)                    pooled student features
    wf_ref     : (C_in, NB*D)                  all branch feature weights
    bf_ref     : (1, NB*D)                     all branch feature biases
    w2_ref     : (NB*D, NB*NC + 2*NBU*Dq)      block-diag classifier | Q | K
    b2_ref     : (1, NB*NC + 2*NBU*Dq)         classifier biases (Q/K bias-free)
    out_ref    : (BT, OUT_W)                   [pro | x_m | last_pro | 0-pad]
    """
    bt = out_ref.shape[0]
    nb = nbu + 1
    q_off = nb * nc
    k_off = q_off + nbu * dq

    pooled = pooled_ref[...]                                      # (BT, C_in)

    # Stage 1: all NB feature layers in one MXU call (lane-dense NB*D = 128).
    xf = jnp.maximum(
        jnp.dot(pooled, wf_ref[...], preferred_element_type=jnp.float32)
        + bf_ref[...], 0.0)                                       # (BT, NB*D)

    # Stage 2: all NB classifiers + NBU query/key projections in one MXU call.
    z = (jnp.dot(xf, w2_ref[...], preferred_element_type=jnp.float32)
         + b2_ref[...])                                           # (BT, W2)

    pro_use = z[:, :nbu * nc]                                     # (BT, NBU*NC)
    last_pro = z[:, nbu * nc:nb * nc]                             # (BT, NC)

    # Attention over NBU branches: energy[b,i,j] = q_i . k_j, softmax over j,
    # xm_i = sum_j attn[b,i,j] * pro_j.  NBU is tiny, keep it unrolled on
    # lane slices; division is exact (approx reciprocal is marginal vs tol).
    xm_parts = []
    for i in range(nbu):
        qi = z[:, q_off + i * dq:q_off + (i + 1) * dq]            # (BT, Dq)
        e = [jnp.sum(qi * z[:, k_off + j * dq:k_off + (j + 1) * dq],
                     axis=-1, keepdims=True)
             for j in range(nbu)]                                 # NBU x (BT,1)
        m = e[0]
        for j in range(1, nbu):
            m = jnp.maximum(m, e[j])
        ex = [jnp.exp(v - m) for v in e]
        denom = ex[0]
        for j in range(1, nbu):
            denom = denom + ex[j]
        inv = 1.0 / denom
        xm_i = (ex[0] * inv) * z[:, 0:nc]
        for j in range(1, nbu):
            xm_i = xm_i + (ex[j] * inv) * z[:, j * nc:(j + 1) * nc]
        xm_parts.append(xm_i)

    # Single lane-dense store: [pro (NBU*NC) | x_m (NBU*NC) | last (NC) | pad].
    pieces = [pro_use] + xm_parts + [last_pro]
    pad_w = out_ref.shape[-1] - out_used
    if pad_w > 0:
        pieces.append(jnp.zeros((bt, pad_w), jnp.float32))
    out_ref[...] = jnp.concatenate(pieces, axis=-1)


def _block_diag(blocks):
    """(N, r, c) stacked blocks -> (N*r, N*c) block-diagonal matrix."""
    n, r, c = blocks.shape
    out = jnp.zeros((n * r, n * c), blocks.dtype)
    for i in range(n):
        out = out.at[i * r:(i + 1) * r, i * c:(i + 1) * c].set(blocks[i])
    return out


@jax.jit
def stunet_forward(x, wf, bf, wc, bc, wq, wk):
    """en=False path: returns (pro, x_m, temp_pro_last) like the PyTorch module."""
    B, C, H, W = x.shape
    NB, _, D = wf.shape
    NC = wc.shape[-1]
    Dq = wq.shape[-1]
    NBU = NB - 1

    # Synthetic student backbone front end (global average pool) hoisted out of
    # the kernel so only (B, C_in) pooled features occupy VMEM.
    pooled = jnp.mean(x.reshape(B, C, H * W), axis=-1)            # (B, C)

    # ---- pack weights into lane-dense fused panels (128-aligned, not 256) ----
    wf_all = jnp.transpose(wf, (1, 0, 2)).reshape(C, NB * D)      # (C, NB*D)
    bf_all = bf.reshape(1, NB * D)
    wc_bd = _block_diag(wc)                                       # (NB*D, NB*NC)
    bc_all = bc.reshape(1, NB * NC)
    wq_bd = _block_diag(jnp.broadcast_to(wq[None], (NBU, D, Dq))) # (NBU*D, NBU*Dq)
    wk_bd = _block_diag(jnp.broadcast_to(wk[None], (NBU, D, Dq)))
    qk_panel = jnp.concatenate([wq_bd, wk_bd], axis=1)            # (NBU*D, 2*NBU*Dq)
    qk_panel = jnp.concatenate(
        [qk_panel, jnp.zeros((D, 2 * NBU * Dq), qk_panel.dtype)], axis=0)
    w2 = jnp.concatenate([wc_bd, qk_panel], axis=1)               # (NB*D, W2)
    b2 = jnp.concatenate(
        [bc_all, jnp.zeros((1, 2 * NBU * Dq), bc_all.dtype)], axis=1)
    W2 = NB * NC + 2 * NBU * Dq

    OUT_USED = 2 * NBU * NC + NC
    OUT_W = ((OUT_USED + 127) // 128) * 128                       # lane-dense store

    # Batch tile: 512 rows is a v7x-safe default (fits 64 MiB VMEM with huge
    # headroom) and past the measured grid-overhead sweet spot; v5e/v6e can go
    # larger.  For tiny B we use the full batch (block == full array dims).
    BT = B if B <= 512 else 512
    grid = (pl.cdiv(B, BT),)

    kernel = functools.partial(_stunet_fused_kernel, nbu=NBU, nc=NC, dq=Dq,
                               out_used=OUT_USED)
    out = pl.pallas_call(
        kernel,
        out_shape=jax.ShapeDtypeStruct((B, OUT_W), jnp.float32),
        grid=grid,
        in_specs=[
            pl.BlockSpec((BT, C), lambda i: (i, 0)),
            pl.BlockSpec((C, NB * D), lambda i: (0, 0)),
            pl.BlockSpec((1, NB * D), lambda i: (0, 0)),
            pl.BlockSpec((NB * D, W2), lambda i: (0, 0)),
            pl.BlockSpec((1, W2), lambda i: (0, 0)),
        ],
        out_specs=pl.BlockSpec((BT, OUT_W), lambda i: (i, 0)),
        compiler_params=pltpu.CompilerParams(
            dimension_semantics=("parallel",)),
    )(pooled, wf_all, bf_all, w2, b2)

    # Split the fused output and move to the PyTorch layout.
    pro = out[:, :NBU * NC].reshape(B, NBU, NC).transpose(0, 2, 1)        # (B,NC,NBU)
    x_m = out[:, NBU * NC:2 * NBU * NC].reshape(B, NBU, NC).transpose(0, 2, 1)
    last_pro = out[:, 2 * NBU * NC:OUT_USED]                              # (B,NC)
    return pro, x_m, last_pro


def reference_forward(x, wf, bf, wc, bc, wq, wk):
    """Pure-JAX reference mirroring the PyTorch forward (en=False)."""
    B, C, H, W = x.shape
    NB = wf.shape[0]
    pooled = jnp.mean(x.reshape(B, C, H * W), axis=-1)

    def student(i):
        xf = jnp.maximum(pooled @ wf[i] + bf[i][None, :], 0.0)
        pro = xf @ wc[i] + bc[i][None, :]
        return xf, pro

    xf0, pro0 = student(0)
    proj_q = (xf0 @ wq)[:, None, :]
    proj_k = (xf0 @ wk)[:, None, :]
    pro = pro0[:, :, None]
    for i in range(1, NB - 1):
        xfi, proi = student(i)
        proj_q = jnp.concatenate([proj_q, (xfi @ wq)[:, None, :]], axis=1)
        proj_k = jnp.concatenate([proj_k, (xfi @ wk)[:, None, :]], axis=1)
        pro = jnp.concatenate([pro, proi[:, :, None]], axis=-1)
    energy = jnp.einsum('bid,bjd->bij', proj_q, proj_k)
    attention = jax.nn.softmax(energy, axis=-1)
    x_m = jnp.einsum('bcj,bij->bci', pro, attention)
    _, last_pro = student(NB - 1)
    return pro, x_m, last_pro


if __name__ == "__main__":
    # Small shapes consistent with the module's forward.
    B, C_in, H, W = 2, 4, 16, 16
    D = 32            # input_channel (feature width fed into query/key)
    factor = 8
    Dq = D // factor  # query/key projection width
    NC = 10           # num_classes
    NB = 4            # num_branches

    key = jax.random.PRNGKey(0)
    kx, k0, k1, k2, k3, k4, k5 = jax.random.split(key, 7)

    x = jax.random.normal(kx, (B, C_in, H, W), dtype=jnp.float32)

    # Deterministic synthetic parameters (per-branch student + shared Q/K).
    wf = jax.random.normal(k0, (NB, C_in, D), dtype=jnp.float32) * 0.2
    bf = jax.random.normal(k1, (NB, D), dtype=jnp.float32) * 0.1
    wc = jax.random.normal(k2, (NB, D, NC), dtype=jnp.float32) * 0.2
    bc = jax.random.normal(k3, (NB, NC), dtype=jnp.float32) * 0.1
    wq = jax.random.normal(k4, (D, Dq), dtype=jnp.float32) * 0.2
    wk = jax.random.normal(k5, (D, Dq), dtype=jnp.float32) * 0.2

    pro, x_m, last_pro = stunet_forward(x, wf, bf, wc, bc, wq, wk)
    jax.block_until_ready((pro, x_m, last_pro))

    pro_ref, x_m_ref, last_ref = reference_forward(x, wf, bf, wc, bc, wq, wk)
    np.testing.assert_allclose(np.asarray(pro), np.asarray(pro_ref),
                               rtol=1e-3, atol=1e-3)
    np.testing.assert_allclose(np.asarray(x_m), np.asarray(x_m_ref),
                               rtol=1e-3, atol=1e-3)
    np.testing.assert_allclose(np.asarray(last_pro), np.asarray(last_ref),
                               rtol=1e-3, atol=1e-3)

    assert pro.shape == (B, NC, NB - 1)
    assert x_m.shape == (B, NC, NB - 1)
    assert last_pro.shape == (B, NC)
    print("KERNEL_OK")
</pallas_src>

<mosaic_0001>
module attributes {stable_mosaic.version = 11 : i64} {
  func.func @_stunet_fused_kernel(%arg0: i32, %arg1: memref<2x4xf32, #tpu.memory_space<vmem>>, %arg2: memref<4x128xf32, #tpu.memory_space<vmem>>, %arg3: memref<1x128xf32, #tpu.memory_space<vmem>>, %arg4: memref<128x64xf32, #tpu.memory_space<vmem>>, %arg5: memref<1x64xf32, #tpu.memory_space<vmem>>, %arg6: memref<2x128xf32, #tpu.memory_space<vmem>>) attributes {dimension_semantics = [#tpu.dimension_semantics<parallel>], iteration_bounds = array<i64: 1>, scalar_prefetch = 0 : i64, scratch_operands = 0 : i64, tpu.core_type = #tpu.core_type<tc>, window_params = [{transform_indices = @transform_0, window_bounds = array<i64: 2, 4>}, {pipeline_mode = #tpu.pipeline_mode<synchronous>, transform_indices = @transform_1, window_bounds = array<i64: 4, 128>}, {pipeline_mode = #tpu.pipeline_mode<synchronous>, transform_indices = @transform_2, window_bounds = array<i64: 1, 128>}, {pipeline_mode = #tpu.pipeline_mode<synchronous>, transform_indices = @transform_3, window_bounds = array<i64: 128, 64>}, {pipeline_mode = #tpu.pipeline_mode<synchronous>, transform_indices = @transform_4, window_bounds = array<i64: 1, 64>}, {transform_indices = @transform_5, window_bounds = array<i64: 2, 128>}]} {
    %c0 = arith.constant 0 : index
    %c0_0 = arith.constant 0 : index
    %0 = vector.load %arg1[%c0, %c0_0] : memref<2x4xf32, #tpu.memory_space<vmem>>, vector<2x4xf32>
    %c0_1 = arith.constant 0 : index
    %c0_2 = arith.constant 0 : index
    %1 = vector.load %arg2[%c0_1, %c0_2] : memref<4x128xf32, #tpu.memory_space<vmem>>, vector<4x128xf32>
    %cst = arith.constant dense<0.000000e+00> : vector<2x128xf32>
    %2 = tpu.matmul %0, %1, %cst {dimension_numbers = #tpu.dot_dimension_numbers<[1], [0], [0], [1], [0, 0, 1, 1], [], []>} : vector<2x4xf32>, vector<4x128xf32>, vector<2x128xf32> -> vector<2x128xf32>
    %c0_3 = arith.constant 0 : index
    %c0_4 = arith.constant 0 : index
    %3 = vector.load %arg3[%c0_3, %c0_4] : memref<1x128xf32, #tpu.memory_space<vmem>>, vector<1x128xf32>
    %4 = vector.broadcast %3 : vector<1x128xf32> to vector<2x128xf32>
    %5 = arith.addf %2, %4 : vector<2x128xf32>
    %cst_5 = arith.constant 0.000000e+00 : f32
    %6 = vector.broadcast %cst_5 : f32 to vector<2x128xf32>
    %7 = arith.maximumf %5, %6 : vector<2x128xf32>
    %c0_6 = arith.constant 0 : index
    %c0_7 = arith.constant 0 : index
    %8 = vector.load %arg4[%c0_6, %c0_7] : memref<128x64xf32, #tpu.memory_space<vmem>>, vector<128x64xf32>
    %cst_8 = arith.constant dense<0.000000e+00> : vector<2x64xf32>
    %9 = tpu.matmul %7, %8, %cst_8 {dimension_numbers = #tpu.dot_dimension_numbers<[1], [0], [0], [1], [0, 0, 1, 1], [], []>} : vector<2x128xf32>, vector<128x64xf32>, vector<2x64xf32> -> vector<2x64xf32>
    %c0_9 = arith.constant 0 : index
    %c0_10 = arith.constant 0 : index
    %10 = vector.load %arg5[%c0_9, %c0_10] : memref<1x64xf32, #tpu.memory_space<vmem>>, vector<1x64xf32>
    %11 = vector.broadcast %10 : vector<1x64xf32> to vector<2x64xf32>
    %12 = arith.addf %9, %11 : vector<2x64xf32>
    %13 = vector.extract_strided_slice %12 {offsets = [0, 0], sizes = [2, 30], strides = [1, 1]} : vector<2x64xf32> to vector<2x30xf32>
    %14 = vector.extract_strided_slice %12 {offsets = [0, 30], sizes = [2, 10], strides = [1, 1]} : vector<2x64xf32> to vector<2x10xf32>
    %15 = vector.extract_strided_slice %12 {offsets = [0, 40], sizes = [2, 4], strides = [1, 1]} : vector<2x64xf32> to vector<2x4xf32>
    %16 = vector.extract_strided_slice %12 {offsets = [0, 52], sizes = [2, 4], strides = [1, 1]} : vector<2x64xf32> to vector<2x4xf32>
    %17 = arith.mulf %15, %16 : vector<2x4xf32>
    %cst_11 = arith.constant dense<0.000000e+00> : vector<2xf32>
    %18 = vector.multi_reduction <add>, %17, %cst_11 [1] : vector<2x4xf32> to vector<2xf32>
    %19 = vector.shape_cast %18 : vector<2xf32> to vector<2x1xf32>
    %20 = vector.extract_strided_slice %12 {offsets = [0, 56], sizes = [2, 4], strides = [1, 1]} : vector<2x64xf32> to vector<2x4xf32>
    %21 = arith.mulf %15, %20 : vector<2x4xf32>
    %cst_12 = arith.constant dense<0.000000e+00> : vector<2xf32>
    %22 = vector.multi_reduction <add>, %21, %cst_12 [1] : vector<2x4xf32> to vector<2xf32>
    %23 = vector.shape_cast %22 : vector<2xf32> to vector<2x1xf32>
    %24 = vector.extract_strided_slice %12 {offsets = [0, 60], sizes = [2, 4], strides = [1, 1]} : vector<2x64xf32> to vector<2x4xf32>
    %25 = arith.mulf %15, %24 : vector<2x4xf32>
    %cst_13 = arith.constant dense<0.000000e+00> : vector<2xf32>
    %26 = vector.multi_reduction <add>, %25, %cst_13 [1] : vector<2x4xf32> to vector<2xf32>
    %27 = vector.shape_cast %26 : vector<2xf32> to vector<2x1xf32>
    %28 = arith.maximumf %19, %23 : vector<2x1xf32>
    %29 = arith.maximumf %28, %27 : vector<2x1xf32>
    %30 = arith.subf %19, %29 : vector<2x1xf32>
    %31 = math.exp %30 : vector<2x1xf32>
    %32 = arith.subf %23, %29 : vector<2x1xf32>
    %33 = math.exp %32 : vector<2x1xf32>
    %34 = arith.subf %27, %29 : vector<2x1xf32>
    %35 = math.exp %34 : vector<2x1xf32>
    %36 = arith.addf %31, %33 : vector<2x1xf32>
    %37 = arith.addf %36, %35 : vector<2x1xf32>
    %cst_14 = arith.constant 1.000000e+00 : f32
    %38 = vector.broadcast %cst_14 : f32 to vector<2x1xf32>
    %39 = arith.divf %38, %37 : vector<2x1xf32>
    %40 = arith.mulf %31, %39 : vector<2x1xf32>
    %41 = vector.extract_strided_slice %12 {offsets = [0, 0], sizes = [2, 10], strides = [1, 1]} : vector<2x64xf32> to vector<2x10xf32>
    %42 = vector.broadcast %40 : vector<2x1xf32> to vector<2x10xf32>
    %43 = arith.mulf %42, %41 : vector<2x10xf32>
    %44 = arith.mulf %33, %39 : vector<2x1xf32>
    %45 = vector.extract_strided_slice %12 {offsets = [0, 10], sizes = [2, 10], strides = [1, 1]} : vector<2x64xf32> to vector<2x10xf32>
    %46 = vector.broadcast %44 : vector<2x1xf32> to vector<2x10xf32>
    %47 = arith.mulf %46, %45 : vector<2x10xf32>
    %48 = arith.addf %43, %47 : vector<2x10xf32>
    %49 = arith.mulf %35, %39 : vector<2x1xf32>
    %50 = vector.extract_strided_slice %12 {offsets = [0, 20], sizes = [2, 10], strides = [1, 1]} : vector<2x64xf32> to vector<2x10xf32>
    %51 = vector.broadcast %49 : vector<2x1xf32> to vector<2x10xf32>
    %52 = arith.mulf %51, %50 : vector<2x10xf32>
    %53 = arith.addf %48, %52 : vector<2x10xf32>
    %54 = vector.extract_strided_slice %12 {offsets = [0, 44], sizes = [2, 4], strides = [1, 1]} : vector<2x64xf32> to vector<2x4xf32>
    %55 = vector.extract_strided_slice %12 {offsets = [0, 52], sizes = [2, 4], strides = [1, 1]} : vector<2x64xf32> to vector<2x4xf32>
    %56 = arith.mulf %54, %55 : vector<2x4xf32>
    %cst_15 = arith.constant dense<0.000000e+00> : vector<2xf32>
    %57 = vector.multi_reduction <add>, %56, %cst_15 [1] : vector<2x4xf32> to vector<2xf32>
    %58 = vector.shape_cast %57 : vector<2xf32> to vector<2x1xf32>
    %59 = vector.extract_strided_slice %12 {offsets = [0, 56], sizes = [2, 4], strides = [1, 1]} : vector<2x64xf32> to vector<2x4xf32>
    %60 = arith.mulf %54, %59 : vector<2x4xf32>
    %cst_16 = arith.constant dense<0.000000e+00> : vector<2xf32>
    %61 = vector.multi_reduction <add>, %60, %cst_16 [1] : vector<2x4xf32> to vector<2xf32>
    %62 = vector.shape_cast %61 : vector<2xf32> to vector<2x1xf32>
    %63 = vector.extract_strided_slice %12 {offsets = [0, 60], sizes = [2, 4], strides = [1, 1]} : vector<2x64xf32> to vector<2x4xf32>
    %64 = arith.mulf %54, %63 : vector<2x4xf32>
    %cst_17 = arith.constant dense<0.000000e+00> : vector<2xf32>
    %65 = vector.multi_reduction <add>, %64, %cst_17 [1] : vector<2x4xf32> to vector<2xf32>
    %66 = vector.shape_cast %65 : vector<2xf32> to vector<2x1xf32>
    %67 = arith.maximumf %58, %62 : vector<2x1xf32>
    %68 = arith.maximumf %67, %66 : vector<2x1xf32>
    %69 = arith.subf %58, %68 : vector<2x1xf32>
    %70 = math.exp %69 : vector<2x1xf32>
    %71 = arith.subf %62, %68 : vector<2x1xf32>
    %72 = math.exp %71 : vector<2x1xf32>
    %73 = arith.subf %66, %68 : vector<2x1xf32>
    %74 = math.exp %73 : vector<2x1xf32>
    %75 = arith.addf %70, %72 : vector<2x1xf32>
    %76 = arith.addf %75, %74 : vector<2x1xf32>
    %cst_18 = arith.constant 1.000000e+00 : f32
    %77 = vector.broadcast %cst_18 : f32 to vector<2x1xf32>
    %78 = arith.divf %77, %76 : vector<2x1xf32>
    %79 = arith.mulf %70, %78 : vector<2x1xf32>
    %80 = vector.extract_strided_slice %12 {offsets = [0, 0], sizes = [2, 10], strides = [1, 1]} : vector<2x64xf32> to vector<2x10xf32>
    %81 = vector.broadcast %79 : vector<2x1xf32> to vector<2x10xf32>
    %82 = arith.mulf %81, %80 : vector<2x10xf32>
    %83 = arith.mulf %72, %78 : vector<2x1xf32>
    %84 = vector.extract_strided_slice %12 {offsets = [0, 10], sizes = [2, 10], strides = [1, 1]} : vector<2x64xf32> to vector<2x10xf32>
    %85 = vector.broadcast %83 : vector<2x1xf32> to vector<2x10xf32>
    %86 = arith.mulf %85, %84 : vector<2x10xf32>
    %87 = arith.addf %82, %86 : vector<2x10xf32>
    %88 = arith.mulf %74, %78 : vector<2x1xf32>
    %89 = vector.extract_strided_slice %12 {offsets = [0, 20], sizes = [2, 10], strides = [1, 1]} : vector<2x64xf32> to vector<2x10xf32>
    %90 = vector.broadcast %88 : vector<2x1xf32> to vector<2x10xf32>
    %91 = arith.mulf %90, %89 : vector<2x10xf32>
    %92 = arith.addf %87, %91 : vector<2x10xf32>
    %93 = vector.extract_strided_slice %12 {offsets = [0, 48], sizes = [2, 4], strides = [1, 1]} : vector<2x64xf32> to vector<2x4xf32>
    %94 = vector.extract_strided_slice %12 {offsets = [0, 52], sizes = [2, 4], strides = [1, 1]} : vector<2x64xf32> to vector<2x4xf32>
    %95 = arith.mulf %93, %94 : vector<2x4xf32>
    %cst_19 = arith.constant dense<0.000000e+00> : vector<2xf32>
    %96 = vector.multi_reduction <add>, %95, %cst_19 [1] : vector<2x4xf32> to vector<2xf32>
    %97 = vector.shape_cast %96 : vector<2xf32> to vector<2x1xf32>
    %98 = vector.extract_strided_slice %12 {offsets = [0, 56], sizes = [2, 4], strides = [1, 1]} : vector<2x64xf32> to vector<2x4xf32>
    %99 = arith.mulf %93, %98 : vector<2x4xf32>
    %cst_20 = arith.constant dense<0.000000e+00> : vector<2xf32>
    %100 = vector.multi_reduction <add>, %99, %cst_20 [1] : vector<2x4xf32> to vector<2xf32>
    %101 = vector.shape_cast %100 : vector<2xf32> to vector<2x1xf32>
    %102 = vector.extract_strided_slice %12 {offsets = [0, 60], sizes = [2, 4], strides = [1, 1]} : vector<2x64xf32> to vector<2x4xf32>
    %103 = arith.mulf %93, %102 : vector<2x4xf32>
    %cst_21 = arith.constant dense<0.000000e+00> : vector<2xf32>
    %104 = vector.multi_reduction <add>, %103, %cst_21 [1] : vector<2x4xf32> to vector<2xf32>
    %105 = vector.shape_cast %104 : vector<2xf32> to vector<2x1xf32>
    %106 = arith.maximumf %97, %101 : vector<2x1xf32>
    %107 = arith.maximumf %106, %105 : vector<2x1xf32>
    %108 = arith.subf %97, %107 : vector<2x1xf32>
    %109 = math.exp %108 : vector<2x1xf32>
    %110 = arith.subf %101, %107 : vector<2x1xf32>
    %111 = math.exp %110 : vector<2x1xf32>
    %112 = arith.subf %105, %107 : vector<2x1xf32>
    %113 = math.exp %112 : vector<2x1xf32>
    %114 = arith.addf %109, %111 : vector<2x1xf32>
    %115 = arith.addf %114, %113 : vector<2x1xf32>
    %cst_22 = arith.constant 1.000000e+00 : f32
    %116 = vector.broadcast %cst_22 : f32 to vector<2x1xf32>
    %117 = arith.divf %116, %115 : vector<2x1xf32>
    %118 = arith.mulf %109, %117 : vector<2x1xf32>
    %119 = vector.extract_strided_slice %12 {offsets = [0, 0], sizes = [2, 10], strides = [1, 1]} : vector<2x64xf32> to vector<2x10xf32>
    %120 = vector.broadcast %118 : vector<2x1xf32> to vector<2x10xf32>
    %121 = arith.mulf %120, %119 : vector<2x10xf32>
    %122 = arith.mulf %111, %117 : vector<2x1xf32>
    %123 = vector.extract_strided_slice %12 {offsets = [0, 10], sizes = [2, 10], strides = [1, 1]} : vector<2x64xf32> to vector<2x10xf32>
    %124 = vector.broadcast %122 : vector<2x1xf32> to vector<2x10xf32>
    %125 = arith.mulf %124, %123 : vector<2x10xf32>
    %126 = arith.addf %121, %125 : vector<2x10xf32>
    %127 = arith.mulf %113, %117 : vector<2x1xf32>
    %128 = vector.extract_strided_slice %12 {offsets = [0, 20], sizes = [2, 10], strides = [1, 1]} : vector<2x64xf32> to vector<2x10xf32>
    %129 = vector.broadcast %127 : vector<2x1xf32> to vector<2x10xf32>
    %130 = arith.mulf %129, %128 : vector<2x10xf32>
    %131 = arith.addf %126, %130 : vector<2x10xf32>
    %cst_23 = arith.constant 0.000000e+00 : f32
    %132 = vector.broadcast %cst_23 : f32 to vector<2x58xf32>
    %133 = tpu.concatenate %13, %53, %92, %131, %14, %132 in 1 : vector<2x30xf32>, vector<2x10xf32>, vector<2x10xf32>, vector<2x10xf32>, vector<2x10xf32>, vector<2x58xf32> -> vector<2x128xf32>
    %c0_24 = arith.constant 0 : index
    %c0_25 = arith.constant 0 : index
    %134 = vector.load %arg6[%c0_24, %c0_25] : memref<2x128xf32, #tpu.memory_space<vmem>>, vector<2x128xf32>
    tpu.vector_store %arg6[%c0_24, %c0_25], %133 {strides = array<i32>} : memref<2x128xf32, #tpu.memory_space<vmem>>, vector<2x128xf32>,
    return
  }
  func.func @transform_0(%arg0: i32) -> (i32, i32) {
    %c0_i32 = arith.constant 0 : i32
    %c0_i32_0 = arith.constant 0 : i32
    return %arg0, %c0_i32 : i32, i32
  }
  func.func @transform_1(%arg0: i32) -> (i32, i32) {
    %c0_i32 = arith.constant 0 : i32
    %c0_i32_0 = arith.constant 0 : i32
    %c0_i32_1 = arith.constant 0 : i32
    return %c0_i32, %c0_i32_0 : i32, i32
  }
  func.func @transform_2(%arg0: i32) -> (i32, i32) {
    %c0_i32 = arith.constant 0 : i32
    %c0_i32_0 = arith.constant 0 : i32
    %c0_i32_1 = arith.constant 0 : i32
    return %c0_i32, %c0_i32_0 : i32, i32
  }
  func.func @transform_3(%arg0: i32) -> (i32, i32) {
    %c0_i32 = arith.constant 0 : i32
    %c0_i32_0 = arith.constant 0 : i32
    %c0_i32_1 = arith.constant 0 : i32
    return %c0_i32, %c0_i32_0 : i32, i32
  }
  func.func @transform_4(%arg0: i32) -> (i32, i32) {
    %c0_i32 = arith.constant 0 : i32
    %c0_i32_0 = arith.constant 0 : i32
    %c0_i32_1 = arith.constant 0 : i32
    return %c0_i32, %c0_i32_0 : i32, i32
  }
  func.func @transform_5(%arg0: i32) -> (i32, i32) {
    %c0_i32 = arith.constant 0 : i32
    %c0_i32_0 = arith.constant 0 : i32
    return %arg0, %c0_i32 : i32, i32
  }
}

</mosaic_0001>

<llo_original>
// kernel: stunet_forward.1
$region0: #{stunet_forward.1}
  #allocation0 [shape = 'u32[]', space=smem, size = 0x4, offset = 0x4, fixed_abs, tag = 'smem constant byte address 0x4 - core index']
  #allocation1 [shape = 'u32[144,128]{1,0:T(1,128)}', space=vmem, size = 0x12000, scoped, tag = 'internal scratch']
  %s0 = inlined_call_operand.vmem [shape: f32[2,4], index: 0, kind: input, shape index: {}]
  %s1 = inlined_call_operand.vmem [shape: f32[4,128], index: 1, kind: input, shape index: {}]
  %s2 = inlined_call_operand.vmem [shape: f32[1,128], index: 2, kind: input, shape index: {}]
  %s3 = inlined_call_operand.vmem [shape: f32[128,64], index: 3, kind: input, shape index: {}]
  %s4 = inlined_call_operand.vmem [shape: f32[1,64], index: 4, kind: input, shape index: {}]
  %s5 = inlined_call_operand.vmem [shape: f32[2,128], index: 5, kind: output, shape index: {}]
  %s6 = sld [smem:[#allocation0]]
  $region30: #{stunet_forward.1} parent=0
    _
  %s8 = ssub.s32 1, %s6
  %s9 = scalar_select 0, %s8, %s6
  // Predicated region
  $region2: #{stunet_forward.1} parent=0 // pred_check
    _
  $region3: #{stunet_forward.1} parent=0 // pred_check_branch
    %11 = sbr.rel (0) target = $region5
  $region4: #{stunet_forward.1} parent=0 // pred_region
    _
  $region5: #{stunet_forward.1} parent=0 // pred_fallthru
    _
  // Predicated region
  $region6: #{stunet_forward.1} parent=0 // pred_check
    _
  $region7: #{stunet_forward.1} parent=0 // pred_check_branch
    %13 = sbr.rel (0) target = $region9
  $region8: #{stunet_forward.1} parent=0 // pred_region
    _
  $region9: #{stunet_forward.1} parent=0 // pred_fallthru
    _
  // Predicated region
  $region10: #{stunet_forward.1} parent=0 // pred_check
    _
  $region11: #{stunet_forward.1} parent=0 // pred_check_branch
    %15 = sbr.rel (0) target = $region13
  $region12: #{stunet_forward.1} parent=0 // pred_region
    _
  $region13: #{stunet_forward.1} parent=0 // pred_fallthru
    _
  // Predicated region
  $region14: #{stunet_forward.1} parent=0 // pred_check
    _
  $region15: #{stunet_forward.1} parent=0 // pred_check_branch
    %17 = sbr.rel (0) target = $region17
  $region16: #{stunet_forward.1} parent=0 // pred_region
    _
  $region17: #{stunet_forward.1} parent=0 // pred_fallthru
    _
  // Predicated region
  $region18: #{stunet_forward.1} parent=0 // pred_check
    _
  $region19: #{stunet_forward.1} parent=0 // pred_check_branch
    %19 = sbr.rel (0) target = $region21
  $region20: #{stunet_forward.1} parent=0 // pred_region
    _
  $region21: #{stunet_forward.1} parent=0 // pred_fallthru
    _
  %v20 = vld [vmem:[%s0] sm:$0x3]
  %v21 = vld [vmem:[%s1] sm:$0xf]
  %v22 = vld [vmem:[%s2] sm:$0x1]
  %v24 = vlaneseq
  %v25 = vshrl.u32 %v24, 7
  %v26 = vsub.s32 0, %v25
  %v27 = vrot.slane %v22, %v26
  %vm29 = vcmask 31744
  %v31 = vsel %vm29, %v20, 0
  %vm33 = vcmask 1043456
  %v35 = vsel %vm33, %v21, 0
  %37 = vmatprep.subr.mxu0 0.0
  %38 = vmatpush1.msra.mxu0 %v35
  %39 = vmatprep.subr.mxu0 0.0
  %40 = vmatpush1.msra.mxu0 0.0
  %41 = vmatprep.subr.mxu0 0.0
  %42 = vmatpush1.msra.mxu0 0.0
  %43 = vmatprep.subr.mxu0 0.0
  %44 = vmatpush1.msra.mxu0 0.0
  %45 = vmatprep.subr.mxu0 0.0
  %46 = vmatpush1.msra.mxu0 0.0
  %47 = vmatprep.subr.mxu0 0.0
  %48 = vmatpush1.msra.mxu0 0.0
  %49 = vmatprep.subr.mxu0 0.0
  %50 = vmatpush1.msra.mxu0 0.0
  %51 = vmatprep.subr.mxu0 0.0
  %52 = vmatpush1.msra.mxu0 0.0
  %53 = vmatprep.subr.mxu0 0.0
  %54 = vmatpush1.msra.mxu0 0.0
  %55 = vmatprep.subr.mxu0 0.0
  %56 = vmatpush1.msra.mxu0 0.0
  %57 = vmatprep.subr.mxu0 0.0
  %58 = vmatpush1.msra.mxu0 0.0
  %59 = vmatprep.subr.mxu0 0.0
  %60 = vmatpush1.msra.mxu0 0.0
  %61 = vmatprep.subr.mxu0 0.0
  %62 = vmatpush1.msra.mxu0 0.0
  %63 = vmatprep.subr.mxu0 0.0
  %64 = vmatpush1.msra.mxu0 0.0
  %65 = vmatprep.subr.mxu0 0.0
  %66 = vmatpush1.msra.mxu0 0.0
  %67 = vmatprep.subr.mxu0 0.0
  %68 = vmatpush1.msra.mxu0 0.0
  %69 = vmatprep.subr.mxu0 0.0
  %70 = vmatpush1.msra.mxu0 0.0
  %71 = vmatprep.subr.mxu0 0.0
  %72 = vmatpush1.msra.mxu0 0.0
  %73 = vmatprep.subr.mxu0 0.0
  %74 = vmatpush1.msra.mxu0 0.0
  %75 = vmatprep.subr.mxu0 0.0
  %76 = vmatpush1.msra.mxu0 0.0
  %77 = vmatprep.subr.mxu0 0.0
  %78 = vmatpush1.msra.mxu0 0.0
  %79 = vmatprep.subr.mxu0 0.0
  %80 = vmatpush1.msra.mxu0 0.0
  %81 = vmatprep.subr.mxu0 0.0
  %82 = vmatpush1.msra.mxu0 0.0
  %83 = vmatprep.subr.mxu0 0.0
  %84 = vmatpush1.msra.mxu0 0.0
  %85 = vmatprep.subr.mxu0 0.0
  %86 = vmatpush1.msra.mxu0 0.0
  %87 = vmatprep.subr.mxu0 0.0
  %88 = vmatpush1.msra.mxu0 0.0
  %89 = vmatprep.subr.mxu0 0.0
  %90 = vmatpush1.msra.mxu0 0.0
  %91 = vmatprep.subr.mxu0 0.0
  %92 = vmatpush1.msra.mxu0 0.0
  %93 = vmatprep.subr.mxu0 0.0
  %94 = vmatpush1.msra.mxu0 0.0
  %95 = vmatprep.subr.mxu0 0.0
  %96 = vmatpush1.msra.mxu0 0.0
  %97 = vmatprep.subr.mxu0 0.0
  %98 = vmatpush1.msra.mxu0 0.0
  %99 = vmatprep.subr.mxu0 0.0
  %100 = vmatpush1.msra.mxu0 0.0
  %101 = vmatprep.mubr.f32.mxu0 0.0
  %102 = vmatmul.mubr.f32.gmra.mrb[0].mxu0 %v31
  %v103 = vpop.f32.mrb[0].mxu0
  %v104 = vadd.f32 %v27, %v103
  %v105 = vpop.f32.mrb[0].mxu0
  %106 = vdwg.mxu0
  %v107 = vmax.f32 %v104, 0.0
  %v108 = vld [vmem:[%s3] sm:$0xff]
  %v109 = vld [vmem:[%s3 + $0x8] sm:$0xff]
  %v110 = vld [vmem:[%s3 + $0x10] sm:$0xff]
  %v111 = vld [vmem:[%s3 + $0x18] sm:$0xff]
  %v112 = vld [vmem:[%s3 + $0x20] sm:$0xff]
  %v113 = vld [vmem:[%s3 + $0x28] sm:$0xff]
  %v114 = vld [vmem:[%s3 + $0x30] sm:$0xff]
  %v115 = vld [vmem:[%s3 + $0x38] sm:$0xff]
  %v116 = vld [vmem:[%s3 + $0x40] sm:$0xff]
  %v117 = vld [vmem:[%s3 + $0x48] sm:$0xff]
  %v118 = vld [vmem:[%s3 + $0x50] sm:$0xff]
  %v119 = vld [vmem:[%s3 + $0x58] sm:$0xff]
  %v120 = vld [vmem:[%s3 + $0x60] sm:$0xff]
  %v121 = vld [vmem:[%s3 + $0x68] sm:$0xff]
  %v122 = vld [vmem:[%s3 + $0x70] sm:$0xff]
  %v123 = vld [vmem:[%s3 + $0x78] sm:$0xff]
  %v124 = vld [vmem:[%s4] sm:$0x1]
  %v126 = vlaneseq
  %v127 = vshrl.u32 %v126, 7
  %v128 = vsub.s32 0, %v127
  %v129 = vrot.slane %v124, %v128
  %131 = vmatprep.subr.mxu0 0.0
  %132 = vmatpush1.msra.mxu0 %v108
  %133 = vmatprep.subr.mxu0 0.0
  %134 = vmatpush1.msra.mxu0 %v109
  %135 = vmatprep.subr.mxu0 0.0
  %136 = vmatpush1.msra.mxu0 %v110
  %137 = vmatprep.subr.mxu0 0.0
  %138 = vmatpush1.msra.mxu0 %v111
  %139 = vmatprep.subr.mxu0 0.0
  %140 = vmatpush1.msra.mxu0 %v112
  %141 = vmatprep.subr.mxu0 0.0
  %142 = vmatpush1.msra.mxu0 %v113
  %143 = vmatprep.subr.mxu0 0.0
  %144 = vmatpush1.msra.mxu0 %v114
  %145 = vmatprep.subr.mxu0 0.0
  %146 = vmatpush1.msra.mxu0 %v115
  %147 = vmatprep.subr.mxu0 0.0
  %148 = vmatpush1.msra.mxu0 %v116
  %149 = vmatprep.subr.mxu0 0.0
  %150 = vmatpush1.msra.mxu0 %v117
  %151 = vmatprep.subr.mxu0 0.0
  %152 = vmatpush1.msra.mxu0 %v118
  %153 = vmatprep.subr.mxu0 0.0
  %154 = vmatpush1.msra.mxu0 %v119
  %155 = vmatprep.subr.mxu0 0.0
  %156 = vmatpush1.msra.mxu0 %v120
  %157 = vmatprep.subr.mxu0 0.0
  %158 = vmatpush1.msra.mxu0 %v121
  %159 = vmatprep.subr.mxu0 0.0
  %160 = vmatpush1.msra.mxu0 %v122
  %161 = vmatprep.subr.mxu0 0.0
  %162 = vmatpush1.msra.mxu0 %v123
  %163 = vmatprep.subr.mxu0 0.0
  %164 = vmatpush1.msra.mxu0 0.0
  %165 = vmatprep.subr.mxu0 0.0
  %166 = vmatpush1.msra.mxu0 0.0
  %167 = vmatprep.subr.mxu0 0.0
  %168 = vmatpush1.msra.mxu0 0.0
  %169 = vmatprep.subr.mxu0 0.0
  %170 = vmatpush1.msra.mxu0 0.0
  %171 = vmatprep.subr.mxu0 0.0
  %172 = vmatpush1.msra.mxu0 0.0
  %173 = vmatprep.subr.mxu0 0.0
  %174 = vmatpush1.msra.mxu0 0.0
  %175 = vmatprep.subr.mxu0 0.0
  %176 = vmatpush1.msra.mxu0 0.0
  %177 = vmatprep.subr.mxu0 0.0
  %178 = vmatpush1.msra.mxu0 0.0
  %179 = vmatprep.subr.mxu0 0.0
  %180 = vmatpush1.msra.mxu0 0.0
  %181 = vmatprep.subr.mxu0 0.0
  %182 = vmatpush1.msra.mxu0 0.0
  %183 = vmatprep.subr.mxu0 0.0
  %184 = vmatpush1.msra.mxu0 0.0
  %185 = vmatprep.subr.mxu0 0.0
  %186 = vmatpush1.msra.mxu0 0.0
  %187 = vmatprep.subr.mxu0 0.0
  %188 = vmatpush1.msra.mxu0 0.0
  %189 = vmatprep.subr.mxu0 0.0
  %190 = vmatpush1.msra.mxu0 0.0
  %191 = vmatprep.subr.mxu0 0.0
  %192 = vmatpush1.msra.mxu0 0.0
  %193 = vmatprep.subr.mxu0 0.0
  %194 = vmatpush1.msra.mxu0 0.0
  %195 = vmatprep.mubr.f32.mxu0 0.0
  %196 = vmatmul.mubr.f32.gmra.mrb[0].mxu0 %v107
  %v197 = vpop.f32.mrb[0].mxu0
  %v198 = vadd.f32 %v129, %v197
  %v199 = vpop.f32.mrb[0].mxu0
  %200 = vdwg.mxu0
  %202 = vrot.lane.b32.xlu0 %v198, 116
  %v203 = vpop.permute.xlu0 %202
  %v205 = vmul.f32 %v198, %v203
  %207 = vrot.lane.b32.xlu0 %v205, 88
  %v208 = vpop.permute.xlu0 %207
  %vm210 = vcmask 25600
  %v211 = vsel %vm210, %v208, 0.0
  %212 = vadd.xlane.f32.xlu0 %v211
  %v213 = vpop.xlane.xlu0 %212
  %214 = vrot.lane.b32.xlu0 %v198, 112
  %v215 = vpop.permute.xlu0 %214
  %v217 = vmul.f32 %v198, %v215
  %219 = vrot.lane.b32.xlu0 %v217, 88
  %v220 = vpop.permute.xlu0 %219
  %v222 = vsel %vm210, %v220, 0.0
  %223 = vadd.xlane.f32.xlu0 %v222
  %v224 = vpop.xlane.xlu0 %223
  %225 = vrot.lane.b32.xlu0 %v198, 108
  %v226 = vpop.permute.xlu0 %225
  %v228 = vmul.f32 %v198, %v226
  %230 = vrot.lane.b32.xlu0 %v228, 88
  %v231 = vpop.permute.xlu0 %230
  %v233 = vsel %vm210, %v231, 0.0
  %234 = vadd.xlane.f32.xlu0 %v233
  %v235 = vpop.xlane.xlu0 %234
  %v236 = vmax.f32 %v213, %v224
  %v237 = vmax.f32 %v236, %v235
  %v238 = vsub.f32 %v213, %v237
  %v239 = vmul.f32 %v238, 1.442695
  %v240 = vpow.pop %v239
  %v241 = vsub.f32 %v224, %v237
  %v242 = vmul.f32 %v241, 1.442695
  %v243 = vpow.pop %v242
  %v244 = vsub.f32 %v235, %v237
  %v245 = vmul.f32 %v244, 1.442695
  %v246 = vpow.pop %v245
  %v247 = vadd.f32 %v240, %v243
  %v248 = vadd.f32 %v247, %v246
  %v249 = vrcp.pop %v248
  %v250 = vmul.f32 1.0, %v249
  %v251 = vmul.f32 %v240, %v250
  %v252 = vmul.f32 %v251, %v198
  %v253 = vmul.f32 %v243, %v250
  %v254 = vmul.f32 %v253, %v198
  %256 = vrot.lane.b32.xlu0 %v254, 118
  %v257 = vpop.permute.xlu0 %256
  %v259 = vadd.f32 %v252, %v257
  %v260 = vmul.f32 %v246, %v250
  %v261 = vmul.f32 %v260, %v198
  %263 = vrot.lane.b32.xlu0 %v261, 108
  %v264 = vpop.permute.xlu0 %263
  %v266 = vadd.f32 %v259, %v264
  %267 = vrot.lane.b32.xlu0 %v198, 120
  %v268 = vpop.permute.xlu0 %267
  %v270 = vmul.f32 %v198, %v268
  %272 = vrot.lane.b32.xlu0 %v270, 84
  %v273 = vpop.permute.xlu0 %272
  %v275 = vsel %vm210, %v273, 0.0
  %276 = vadd.xlane.f32.xlu0 %v275
  %v277 = vpop.xlane.xlu0 %276
  %278 = vrot.lane.b32.xlu0 %v205, 84
  %v279 = vpop.permute.xlu0 %278
  %v281 = vsel %vm210, %v279, 0.0
  %282 = vadd.xlane.f32.xlu0 %v281
  %v283 = vpop.xlane.xlu0 %282
  %284 = vrot.lane.b32.xlu0 %v217, 84
  %v285 = vpop.permute.xlu0 %284
  %v287 = vsel %vm210, %v285, 0.0
  %288 = vadd.xlane.f32.xlu0 %v287
  %v289 = vpop.xlane.xlu0 %288
  %v290 = vmax.f32 %v277, %v283
  %v291 = vmax.f32 %v290, %v289
  %v292 = vsub.f32 %v277, %v291
  %v293 = vmul.f32 %v292, 1.442695
  %v294 = vpow.pop %v293
  %v295 = vsub.f32 %v283, %v291
  %v296 = vmul.f32 %v295, 1.442695
  %v297 = vpow.pop %v296
  %v298 = vsub.f32 %v289, %v291
  %v299 = vmul.f32 %v298, 1.442695
  %v300 = vpow.pop %v299
  %v301 = vadd.f32 %v294, %v297
  %v302 = vadd.f32 %v301, %v300
  %v303 = vrcp.pop %v302
  %v304 = vmul.f32 1.0, %v303
  %v305 = vmul.f32 %v294, %v304
  %v306 = vmul.f32 %v305, %v198
  %v307 = vmul.f32 %v297, %v304
  %v308 = vmul.f32 %v307, %v198
  %310 = vrot.lane.b32.xlu0 %v308, 118
  %v311 = vpop.permute.xlu0 %310
  %v313 = vadd.f32 %v306, %v311
  %v314 = vmul.f32 %v300, %v304
  %v315 = vmul.f32 %v314, %v198
  %317 = vrot.lane.b32.xlu0 %v315, 108
  %v318 = vpop.permute.xlu0 %317
  %v320 = vadd.f32 %v313, %v318
  %321 = vrot.lane.b32.xlu0 %v198, 124
  %v322 = vpop.permute.xlu0 %321
  %v324 = vmul.f32 %v198, %v322
  %326 = vrot.lane.b32.xlu0 %v324, 80
  %v327 = vpop.permute.xlu0 %326
  %v329 = vsel %vm210, %v327, 0.0
  %330 = vadd.xlane.f32.xlu0 %v329
  %v331 = vpop.xlane.xlu0 %330
  %332 = vrot.lane.b32.xlu0 %v270, 80
  %v333 = vpop.permute.xlu0 %332
  %v335 = vsel %vm210, %v333, 0.0
  %336 = vadd.xlane.f32.xlu0 %v335
  %v337 = vpop.xlane.xlu0 %336
  %338 = vrot.lane.b32.xlu0 %v205, 80
  %v339 = vpop.permute.xlu0 %338
  %v341 = vsel %vm210, %v339, 0.0
  %342 = vadd.xlane.f32.xlu0 %v341
  %v343 = vpop.xlane.xlu0 %342
  %v344 = vmax.f32 %v331, %v337
  %v345 = vmax.f32 %v344, %v343
  %v346 = vsub.f32 %v331, %v345
  %v347 = vmul.f32 %v346, 1.442695
  %v348 = vpow.pop %v347
  %v349 = vsub.f32 %v337, %v345
  %v350 = vmul.f32 %v349, 1.442695
  %v351 = vpow.pop %v350
  %v352 = vsub.f32 %v343, %v345
  %v353 = vmul.f32 %v352, 1.442695
  %v354 = vpow.pop %v353
  %v355 = vadd.f32 %v348, %v351
  %v356 = vadd.f32 %v355, %v354
  %v357 = vrcp.pop %v356
  %v358 = vmul.f32 1.0, %v357
  %v359 = vmul.f32 %v348, %v358
  %v360 = vmul.f32 %v359, %v198
  %v361 = vmul.f32 %v351, %v358
  %v362 = vmul.f32 %v361, %v198
  %364 = vrot.lane.b32.xlu0 %v362, 118
  %v365 = vpop.permute.xlu0 %364
  %v367 = vadd.f32 %v360, %v365
  %v368 = vmul.f32 %v354, %v358
  %v369 = vmul.f32 %v368, %v198
  %371 = vrot.lane.b32.xlu0 %v369, 108
  %v372 = vpop.permute.xlu0 %371
  %v374 = vadd.f32 %v367, %v372
  %376 = vrot.lane.b32.xlu0 %v266, 30
  %v377 = vpop.permute.xlu0 %376
  %380 = vrot.lane.b32.xlu0 %v320, 40
  %v381 = vpop.permute.xlu0 %380
  %384 = vrot.lane.b32.xlu0 %v374, 50
  %v385 = vpop.permute.xlu0 %384
  %387 = vrot.lane.b32.xlu0 %v198, 30
  %v388 = vpop.permute.xlu0 %387
  %vm390 = vcmask 244736
  %v391 = vsel %vm390, %v198, %v377
  %vm392 = vcmask 326656
  %v393 = vsel %vm392, %v391, %v381
  %vm394 = vcmask 408576
  %v395 = vsel %vm394, %v393, %v385
  %vm396 = vcmask 490496
  %v397 = vsel %vm396, %v395, %v388
  %vm398 = vcmask 572416
  %v399 = vsel %vm398, %v397, 0.0
  %400 = vst [vmem:[%s5] sm:$0x3] %v399
  // Predicated region
  $region22: #{stunet_forward.1} parent=0 // pred_check
    _
  $region23: #{stunet_forward.1} parent=0 // pred_check_branch
    %402 = sbr.rel (0) target = $region25
  $region24: #{stunet_forward.1} parent=0 // pred_region
    _
  $region25: #{stunet_forward.1} parent=0 // pred_fallthru
    _
  // Predicated region
  $region26: #{stunet_forward.1} parent=0 // pred_check
    _
  $region27: #{stunet_forward.1} parent=0 // pred_check_branch
    %404 = sbr.rel (0) target = $region29
  $region28: #{stunet_forward.1} parent=0 // pred_region
    _
  $region29: #{stunet_forward.1} parent=0 // pred_fallthru
    _

</llo_original>
